<compile_context>
chip_gen: v7x
topology: tpu7x:2x2x1
jax: 0.10.0
libtpu: 0.0.40
codegen_flags: <defaults>
</compile_context>

<pallas_src>
import functools

import jax
import jax.numpy as jnp
from jax.experimental import pallas as pl
from jax.experimental.pallas import tpu as pltpu

LANE = 128  # TPU lane width


def _round_up(n, m):
    return ((n + m - 1) // m) * m


def _num_tensorcores():
    """2 TensorCores per chip on v7x, 1 on v5e/v6e (best-effort detection)."""
    try:
        kind = jax.devices()[0].device_kind.lower()
    except Exception:
        return 1
    return 2 if ("v7" in kind or "7x" in kind) else 1


def _mlp_kernel(x_ref, w1_ref, w2_ref, w3_ref, w4_ref, b_ref, o_ref, *,
                hid_p, out_dim):
    """One batch tile of the 4-layer MLP.

    x_ref : (TB, IN)   f32   (cast to bf16 in-kernel; free filler under the MXU)
    wN_ref: padded bf16 weights, resident across grid steps
    b_ref : (4, BMAX)  f32   packed biases, resident
    o_ref : (TB, OUT)  f32   narrow output (OUT = real output_dim)
    """
    b = b_ref[...]
    x = x_ref[...].astype(jnp.bfloat16)

    # Layer 1: Linear + ReLU  (Dropout = identity at inference)
    h = jnp.dot(x, w1_ref[...], preferred_element_type=jnp.float32)
    h = jnp.maximum(h + b[0:1, :hid_p], 0.0)
    # Layer 2: Linear + ReLU
    h = jnp.dot(h.astype(jnp.bfloat16), w2_ref[...],
                preferred_element_type=jnp.float32)
    h = jnp.maximum(h + b[1:2, :hid_p], 0.0)
    # Layer 3: Linear + ReLU
    h = jnp.dot(h.astype(jnp.bfloat16), w3_ref[...],
                preferred_element_type=jnp.float32)
    h = jnp.maximum(h + b[2:3, :hid_p], 0.0)
    # Output layer: Linear + sigmoid; keep/store only the real output lanes.
    y = jnp.dot(h.astype(jnp.bfloat16), w4_ref[...],
                preferred_element_type=jnp.float32)
    y = y[:, :out_dim] + b[3:4, :out_dim]
    o_ref[...] = jax.nn.sigmoid(y)


def pack_params(params):
    """Pad params for MXU-friendly shapes.  params = 4x (W[in,out] f32, b[out]).
    in_dim is NOT padded (full-dim blocks); hidden/output columns pad to 128.
    Returns bf16 padded weights, packed f32 biases (4, BMAX), and dims."""
    assert len(params) == 4, "kernel is specialized for n_layer=4 (module default)"
    (w1, b1), (w2, b2), (w3, b3), (w4, b4) = params
    in_dim, hid_dim = w1.shape
    out_dim = w4.shape[1]
    hid_p = _round_up(hid_dim, LANE)
    out_p = _round_up(out_dim, LANE)
    bmax = max(hid_p, out_p)

    def pad_w(w, rp, cp):
        r, c = w.shape
        return jnp.pad(w, ((0, rp - r), (0, cp - c))).astype(jnp.bfloat16)

    def pad_b(b):
        b = jnp.reshape(b, (-1,)).astype(jnp.float32)
        return jnp.pad(b, (0, bmax - b.shape[0]))

    ws = (pad_w(w1, in_dim, hid_p), pad_w(w2, hid_p, hid_p),
          pad_w(w3, hid_p, hid_p), pad_w(w4, hid_p, out_p))
    bs = jnp.stack([pad_b(b1), pad_b(b2), pad_b(b3), pad_b(b4)])  # (4, BMAX)
    dims = dict(in_dim=in_dim, hid_dim=hid_dim, out_dim=out_dim,
                hid_p=hid_p, out_p=out_p, bmax=bmax)
    return ws, bs, dims


def discriminator2_forward(x, params, *, tb=None):
    """x: (B, input_dim) float32.  params: list of 4 (W[in,out], b[out])."""
    ws, bs, d = pack_params(params)
    B, in_dim = x.shape
    assert in_dim == d["in_dim"]
    hid_p, out_p, out_dim, bmax = d["hid_p"], d["out_p"], d["out_dim"], d["bmax"]

    # Batch tile: as few / as large grid steps as possible (per-step overhead
    # dominates; VMEM is not the constraint).  On v7x use 128-granularity so
    # the >=2-step grid shards across both TensorCores via "parallel".
    n_cores = _num_tensorcores()
    if tb is None:
        gran = 128 if n_cores == 2 else 256
        tb = _round_up(pl.cdiv(max(B, 1), n_cores), gran)
        tb = min(tb, 4096)  # double-buffered tiles + intermediates stay << 32 MiB
    b_pad = _round_up(max(B, 1), tb)

    # Only the batch dim is padded, with explicit zeros (avoid OOB-garbage x 0
    # = NaN).  x stays f32 -> no wrapper cast/pad round trip over the features.
    xp = x if b_pad == B else jnp.pad(x, ((0, b_pad - B), (0, 0)))

    kernel = functools.partial(_mlp_kernel, hid_p=hid_p, out_dim=out_dim)
    resident = lambda i: (0, 0)  # same block every step -> stays VMEM-resident

    flops = 2 * b_pad * (in_dim * hid_p + 2 * hid_p * hid_p + hid_p * out_p)
    bytes_accessed = (xp.size * 4 + sum(w.size for w in ws) * 2
                      + bs.size * 4 + b_pad * out_dim * 4)

    out = pl.pallas_call(
        kernel,
        out_shape=jax.ShapeDtypeStruct((b_pad, out_dim), jnp.float32),
        grid=(b_pad // tb,),
        in_specs=[
            pl.BlockSpec((tb, in_dim), lambda i: (i, 0)),   # x tile (full last dim)
            pl.BlockSpec((in_dim, hid_p), resident),        # W1
            pl.BlockSpec((hid_p, hid_p), resident),         # W2
            pl.BlockSpec((hid_p, hid_p), resident),         # W3
            pl.BlockSpec((hid_p, out_p), resident),         # W4
            pl.BlockSpec((4, bmax), resident),              # packed biases
        ],
        out_specs=pl.BlockSpec((tb, out_dim), lambda i: (i, 0)),  # narrow output
        compiler_params=pltpu.CompilerParams(
            dimension_semantics=("parallel",),
            vmem_limit_bytes=32 * 1024 * 1024,
        ),
        cost_estimate=pl.CostEstimate(
            flops=flops,
            transcendentals=b_pad * out_dim,
            bytes_accessed=bytes_accessed,
        ),
    )(xp, *ws, bs)

    # Only batch padding (if any) needs slicing; the output is already narrow.
    return out if b_pad == B else out[:B]


def init_params(key, input_dim, hidden_dim, output_dim, n_layer=4):
    """Deterministic init mimicking nn.Linear (uniform +/- 1/sqrt(fan_in)).
    Weights stored as (in, out) = PyTorch weight.T; biases as (out,)."""
    dims = [input_dim] + [hidden_dim] * (n_layer - 1) + [output_dim]
    params = []
    for i in range(n_layer):
        fan_in, fan_out = dims[i], dims[i + 1]
        key, kw, kb = jax.random.split(key, 3)
        bound = 1.0 / jnp.sqrt(fan_in)
        w = jax.random.uniform(kw, (fan_in, fan_out), jnp.float32, -bound, bound)
        b = jax.random.uniform(kb, (fan_out,), jnp.float32, -bound, bound)
        params.append((w, b))
    return params


def reference_forward(x, params, dtype=jnp.float32):
    """Pure-JAX reference.  dtype=bfloat16 reproduces the kernel's operand casts."""
    h = x
    n = len(params)
    for i, (w, b) in enumerate(params):
        h = jnp.dot(h.astype(dtype), w.astype(dtype),
                    preferred_element_type=jnp.float32) + b.reshape(1, -1)
        if i < n - 1:
            h = jnp.maximum(h, 0.0)
    return jax.nn.sigmoid(h)


if __name__ == "__main__":
    # Module-consistent small shapes: input_dim=16, hidden_dim=32, output_dim=1,
    # n_layer=4.  Batch of 200 exercises batch padding and the adaptive tile.
    IN_DIM, HID_DIM, OUT_DIM, N_LAYER = 16, 32, 1, 4
    B = 200

    key = jax.random.PRNGKey(0)
    key, kx = jax.random.split(key)
    x = jax.random.normal(kx, (B, IN_DIM), jnp.float32)
    params = init_params(key, IN_DIM, HID_DIM, OUT_DIM, n_layer=N_LAYER)

    out = jax.block_until_ready(discriminator2_forward(x, params))

    ref_bf16 = reference_forward(x, params, dtype=jnp.bfloat16)  # same math as kernel
    ref_f32 = reference_forward(x, params, dtype=jnp.float32)    # original f32 module

    assert out.shape == (B, OUT_DIM)
    assert jnp.allclose(out, ref_bf16, atol=1e-4, rtol=1e-4), "mismatch vs bf16 reference"
    assert jnp.allclose(out, ref_f32, atol=3e-2, rtol=3e-2), "mismatch vs f32 reference"

    print("KERNEL_OK")
</pallas_src>

<mosaic_0001>
module attributes {stable_mosaic.version = 11 : i64} {
  func.func @_mlp_kernel(%arg0: i32, %arg1: memref<256x16xf32, #tpu.memory_space<vmem>>, %arg2: memref<16x128xbf16, #tpu.memory_space<vmem>>, %arg3: memref<128x128xbf16, #tpu.memory_space<vmem>>, %arg4: memref<128x128xbf16, #tpu.memory_space<vmem>>, %arg5: memref<128x128xbf16, #tpu.memory_space<vmem>>, %arg6: memref<4x128xf32, #tpu.memory_space<vmem>>, %arg7: memref<256x1xf32, #tpu.memory_space<vmem>>) attributes {dimension_semantics = [#tpu.dimension_semantics<parallel>], iteration_bounds = array<i64: 1>, scalar_prefetch = 0 : i64, scratch_operands = 0 : i64, tpu.core_type = #tpu.core_type<tc>, window_params = [{transform_indices = @transform_0, window_bounds = array<i64: 256, 16>}, {pipeline_mode = #tpu.pipeline_mode<synchronous>, transform_indices = @transform_1, window_bounds = array<i64: 16, 128>}, {pipeline_mode = #tpu.pipeline_mode<synchronous>, transform_indices = @transform_2, window_bounds = array<i64: 128, 128>}, {pipeline_mode = #tpu.pipeline_mode<synchronous>, transform_indices = @transform_3, window_bounds = array<i64: 128, 128>}, {pipeline_mode = #tpu.pipeline_mode<synchronous>, transform_indices = @transform_4, window_bounds = array<i64: 128, 128>}, {pipeline_mode = #tpu.pipeline_mode<synchronous>, transform_indices = @transform_5, window_bounds = array<i64: 4, 128>}, {transform_indices = @transform_6, window_bounds = array<i64: 256, 1>}]} {
    %c0 = arith.constant 0 : index
    %c0_0 = arith.constant 0 : index
    %0 = vector.load %arg6[%c0, %c0_0] : memref<4x128xf32, #tpu.memory_space<vmem>>, vector<4x128xf32>
    %c0_1 = arith.constant 0 : index
    %c0_2 = arith.constant 0 : index
    %1 = vector.load %arg1[%c0_1, %c0_2] : memref<256x16xf32, #tpu.memory_space<vmem>>, vector<256x16xf32>
    %2 = arith.truncf %1 : vector<256x16xf32> to vector<256x16xbf16>
    %c0_3 = arith.constant 0 : index
    %c0_4 = arith.constant 0 : index
    %3 = vector.load %arg2[%c0_3, %c0_4] : memref<16x128xbf16, #tpu.memory_space<vmem>>, vector<16x128xbf16>
    %cst = arith.constant dense<0.000000e+00> : vector<256x128xf32>
    %4 = tpu.matmul %2, %3, %cst {dimension_numbers = #tpu.dot_dimension_numbers<[1], [0], [0], [1], [0, 0, 1, 1], [], []>} : vector<256x16xbf16>, vector<16x128xbf16>, vector<256x128xf32> -> vector<256x128xf32>
    %5 = vector.extract_strided_slice %0 {offsets = [0, 0], sizes = [1, 128], strides = [1, 1]} : vector<4x128xf32> to vector<1x128xf32>
    %6 = vector.broadcast %5 : vector<1x128xf32> to vector<256x128xf32>
    %7 = arith.addf %4, %6 : vector<256x128xf32>
    %cst_5 = arith.constant 0.000000e+00 : f32
    %8 = vector.broadcast %cst_5 : f32 to vector<256x128xf32>
    %9 = arith.maximumf %7, %8 : vector<256x128xf32>
    %10 = arith.truncf %9 : vector<256x128xf32> to vector<256x128xbf16>
    %c0_6 = arith.constant 0 : index
    %c0_7 = arith.constant 0 : index
    %11 = vector.load %arg3[%c0_6, %c0_7] : memref<128x128xbf16, #tpu.memory_space<vmem>>, vector<128x128xbf16>
    %cst_8 = arith.constant dense<0.000000e+00> : vector<256x128xf32>
    %12 = tpu.matmul %10, %11, %cst_8 {dimension_numbers = #tpu.dot_dimension_numbers<[1], [0], [0], [1], [0, 0, 1, 1], [], []>} : vector<256x128xbf16>, vector<128x128xbf16>, vector<256x128xf32> -> vector<256x128xf32>
    %13 = vector.extract_strided_slice %0 {offsets = [1, 0], sizes = [1, 128], strides = [1, 1]} : vector<4x128xf32> to vector<1x128xf32>
    %14 = vector.broadcast %13 : vector<1x128xf32> to vector<256x128xf32>
    %15 = arith.addf %12, %14 : vector<256x128xf32>
    %cst_9 = arith.constant 0.000000e+00 : f32
    %16 = vector.broadcast %cst_9 : f32 to vector<256x128xf32>
    %17 = arith.maximumf %15, %16 : vector<256x128xf32>
    %18 = arith.truncf %17 : vector<256x128xf32> to vector<256x128xbf16>
    %c0_10 = arith.constant 0 : index
    %c0_11 = arith.constant 0 : index
    %19 = vector.load %arg4[%c0_10, %c0_11] : memref<128x128xbf16, #tpu.memory_space<vmem>>, vector<128x128xbf16>
    %cst_12 = arith.constant dense<0.000000e+00> : vector<256x128xf32>
    %20 = tpu.matmul %18, %19, %cst_12 {dimension_numbers = #tpu.dot_dimension_numbers<[1], [0], [0], [1], [0, 0, 1, 1], [], []>} : vector<256x128xbf16>, vector<128x128xbf16>, vector<256x128xf32> -> vector<256x128xf32>
    %21 = vector.extract_strided_slice %0 {offsets = [2, 0], sizes = [1, 128], strides = [1, 1]} : vector<4x128xf32> to vector<1x128xf32>
    %22 = vector.broadcast %21 : vector<1x128xf32> to vector<256x128xf32>
    %23 = arith.addf %20, %22 : vector<256x128xf32>
    %cst_13 = arith.constant 0.000000e+00 : f32
    %24 = vector.broadcast %cst_13 : f32 to vector<256x128xf32>
    %25 = arith.maximumf %23, %24 : vector<256x128xf32>
    %26 = arith.truncf %25 : vector<256x128xf32> to vector<256x128xbf16>
    %c0_14 = arith.constant 0 : index
    %c0_15 = arith.constant 0 : index
    %27 = vector.load %arg5[%c0_14, %c0_15] : memref<128x128xbf16, #tpu.memory_space<vmem>>, vector<128x128xbf16>
    %cst_16 = arith.constant dense<0.000000e+00> : vector<256x128xf32>
    %28 = tpu.matmul %26, %27, %cst_16 {dimension_numbers = #tpu.dot_dimension_numbers<[1], [0], [0], [1], [0, 0, 1, 1], [], []>} : vector<256x128xbf16>, vector<128x128xbf16>, vector<256x128xf32> -> vector<256x128xf32>
    %29 = vector.extract_strided_slice %28 {offsets = [0, 0], sizes = [256, 1], strides = [1, 1]} : vector<256x128xf32> to vector<256x1xf32>
    %30 = vector.extract_strided_slice %0 {offsets = [3, 0], sizes = [1, 1], strides = [1, 1]} : vector<4x128xf32> to vector<1x1xf32>
    %31 = vector.broadcast %30 : vector<1x1xf32> to vector<256x1xf32>
    %32 = arith.addf %29, %31 : vector<256x1xf32>
    %33 = arith.negf %32 : vector<256x1xf32>
    %34 = math.exp %33 : vector<256x1xf32>
    %cst_17 = arith.constant 1.000000e+00 : f32
    %35 = vector.broadcast %cst_17 : f32 to vector<256x1xf32>
    %36 = arith.addf %35, %34 : vector<256x1xf32>
    %37 = arith.divf %35, %36 : vector<256x1xf32>
    %c0_18 = arith.constant 0 : index
    %c0_19 = arith.constant 0 : index
    %38 = vector.load %arg7[%c0_18, %c0_19] : memref<256x1xf32, #tpu.memory_space<vmem>>, vector<256x1xf32>
    tpu.vector_store %arg7[%c0_18, %c0_19], %37 {strides = array<i32>} : memref<256x1xf32, #tpu.memory_space<vmem>>, vector<256x1xf32>,
    return
  }
  func.func @transform_0(%arg0: i32) -> (i32, i32) {
    %c0_i32 = arith.constant 0 : i32
    %c0_i32_0 = arith.constant 0 : i32
    return %arg0, %c0_i32 : i32, i32
  }
  func.func @transform_1(%arg0: i32) -> (i32, i32) {
    %c0_i32 = arith.constant 0 : i32
    %c0_i32_0 = arith.constant 0 : i32
    %c0_i32_1 = arith.constant 0 : i32
    return %c0_i32, %c0_i32_0 : i32, i32
  }
  func.func @transform_2(%arg0: i32) -> (i32, i32) {
    %c0_i32 = arith.constant 0 : i32
    %c0_i32_0 = arith.constant 0 : i32
    %c0_i32_1 = arith.constant 0 : i32
    return %c0_i32, %c0_i32_0 : i32, i32
  }
  func.func @transform_3(%arg0: i32) -> (i32, i32) {
    %c0_i32 = arith.constant 0 : i32
    %c0_i32_0 = arith.constant 0 : i32
    %c0_i32_1 = arith.constant 0 : i32
    return %c0_i32, %c0_i32_0 : i32, i32
  }
  func.func @transform_4(%arg0: i32) -> (i32, i32) {
    %c0_i32 = arith.constant 0 : i32
    %c0_i32_0 = arith.constant 0 : i32
    %c0_i32_1 = arith.constant 0 : i32
    return %c0_i32, %c0_i32_0 : i32, i32
  }
  func.func @transform_5(%arg0: i32) -> (i32, i32) {
    %c0_i32 = arith.constant 0 : i32
    %c0_i32_0 = arith.constant 0 : i32
    %c0_i32_1 = arith.constant 0 : i32
    return %c0_i32, %c0_i32_0 : i32, i32
  }
  func.func @transform_6(%arg0: i32) -> (i32, i32) {
    %c0_i32 = arith.constant 0 : i32
    %c0_i32_0 = arith.constant 0 : i32
    return %arg0, %c0_i32 : i32, i32
  }
}

</mosaic_0001>

<llo_original>
// kernel: tpu_custom_call.1
$region0: #{tpu_custom_call.1}
  #allocation0 [shape = 'u32[]', space=smem, size = 0x4, offset = 0x4, fixed_abs, tag = 'smem constant byte address 0x4 - core index']
  #allocation1 [shape = 'u32[144,128]{1,0:T(1,128)}', space=vmem, size = 0x12000, scoped, tag = 'internal scratch']
  %s0 = inlined_call_operand.vmem [shape: f32[256,16], index: 0, kind: input, shape index: {}]
  %s1 = inlined_call_operand.vmem [shape: bf16[16,128], index: 1, kind: input, shape index: {}]
  %s2 = inlined_call_operand.vmem [shape: bf16[128,128], index: 2, kind: input, shape index: {}]
  %s3 = inlined_call_operand.vmem [shape: bf16[128,128], index: 3, kind: input, shape index: {}]
  %s4 = inlined_call_operand.vmem [shape: bf16[128,128], index: 4, kind: input, shape index: {}]
  %s5 = inlined_call_operand.vmem [shape: f32[4,128], index: 5, kind: input, shape index: {}]
  %s6 = inlined_call_operand.vmem [shape: f32[256,1], index: 6, kind: output, shape index: {}]
  %s7 = sld [smem:[#allocation0]]
  $region34: #{tpu_custom_call.1} parent=0
    _
  %s9 = ssub.s32 1, %s7
  %s10 = scalar_select 0, %s9, %s7
  // Predicated region
  $region2: #{tpu_custom_call.1} parent=0 // pred_check
    _
  $region3: #{tpu_custom_call.1} parent=0 // pred_check_branch
    %12 = sbr.rel (0) target = $region5
  $region4: #{tpu_custom_call.1} parent=0 // pred_region
    _
  $region5: #{tpu_custom_call.1} parent=0 // pred_fallthru
    _
  // Predicated region
  $region6: #{tpu_custom_call.1} parent=0 // pred_check
    _
  $region7: #{tpu_custom_call.1} parent=0 // pred_check_branch
    %14 = sbr.rel (0) target = $region9
  $region8: #{tpu_custom_call.1} parent=0 // pred_region
    _
  $region9: #{tpu_custom_call.1} parent=0 // pred_fallthru
    _
  // Predicated region
  $region10: #{tpu_custom_call.1} parent=0 // pred_check
    _
  $region11: #{tpu_custom_call.1} parent=0 // pred_check_branch
    %16 = sbr.rel (0) target = $region13
  $region12: #{tpu_custom_call.1} parent=0 // pred_region
    _
  $region13: #{tpu_custom_call.1} parent=0 // pred_fallthru
    _
  // Predicated region
  $region14: #{tpu_custom_call.1} parent=0 // pred_check
    _
  $region15: #{tpu_custom_call.1} parent=0 // pred_check_branch
    %18 = sbr.rel (0) target = $region17
  $region16: #{tpu_custom_call.1} parent=0 // pred_region
    _
  $region17: #{tpu_custom_call.1} parent=0 // pred_fallthru
    _
  // Predicated region
  $region18: #{tpu_custom_call.1} parent=0 // pred_check
    _
  $region19: #{tpu_custom_call.1} parent=0 // pred_check_branch
    %20 = sbr.rel (0) target = $region21
  $region20: #{tpu_custom_call.1} parent=0 // pred_region
    _
  $region21: #{tpu_custom_call.1} parent=0 // pred_fallthru
    _
  // Predicated region
  $region22: #{tpu_custom_call.1} parent=0 // pred_check
    _
  $region23: #{tpu_custom_call.1} parent=0 // pred_check_branch
    %22 = sbr.rel (0) target = $region25
  $region24: #{tpu_custom_call.1} parent=0 // pred_region
    _
  $region25: #{tpu_custom_call.1} parent=0 // pred_fallthru
    _
  %v24 = vld [vmem:[%s5] sm:$0xf]
  %v25 = vld [vmem:[%s0] sm:$0xff]
  %v26 = vld [vmem:[%s0 + $0x8] sm:$0xff]
  %v27 = vld [vmem:[%s0 + $0x10] sm:$0xff]
  %v28 = vld [vmem:[%s0 + $0x18] sm:$0xff]
  %v29 = vld [vmem:[%s0 + $0x20] sm:$0xff]
  %v30 = vld [vmem:[%s0 + $0x28] sm:$0xff]
  %v31 = vld [vmem:[%s0 + $0x30] sm:$0xff]
  %v32 = vld [vmem:[%s0 + $0x38] sm:$0xff]
  %v33 = vld [vmem:[%s0 + $0x40] sm:$0xff]
  %v34 = vld [vmem:[%s0 + $0x48] sm:$0xff]
  %v35 = vld [vmem:[%s0 + $0x50] sm:$0xff]
  %v36 = vld [vmem:[%s0 + $0x58] sm:$0xff]
  %v37 = vld [vmem:[%s0 + $0x60] sm:$0xff]
  %v38 = vld [vmem:[%s0 + $0x68] sm:$0xff]
  %v39 = vld [vmem:[%s0 + $0x70] sm:$0xff]
  %v40 = vld [vmem:[%s0 + $0x78] sm:$0xff]
  %v41 = vld [vmem:[%s0 + $0x80] sm:$0xff]
  %v42 = vld [vmem:[%s0 + $0x88] sm:$0xff]
  %v43 = vld [vmem:[%s0 + $0x90] sm:$0xff]
  %v44 = vld [vmem:[%s0 + $0x98] sm:$0xff]
  %v45 = vld [vmem:[%s0 + $0xa0] sm:$0xff]
  %v46 = vld [vmem:[%s0 + $0xa8] sm:$0xff]
  %v47 = vld [vmem:[%s0 + $0xb0] sm:$0xff]
  %v48 = vld [vmem:[%s0 + $0xb8] sm:$0xff]
  %v49 = vld [vmem:[%s0 + $0xc0] sm:$0xff]
  %v50 = vld [vmem:[%s0 + $0xc8] sm:$0xff]
  %v51 = vld [vmem:[%s0 + $0xd0] sm:$0xff]
  %v52 = vld [vmem:[%s0 + $0xd8] sm:$0xff]
  %v53 = vld [vmem:[%s0 + $0xe0] sm:$0xff]
  %v54 = vld [vmem:[%s0 + $0xe8] sm:$0xff]
  %v55 = vld [vmem:[%s0 + $0xf0] sm:$0xff]
  %v56 = vld [vmem:[%s0 + $0xf8] sm:$0xff]
  %v57 = vpack.c.bf16 %v26, %v25
  %v58 = vpack.c.bf16 %v28, %v27
  %v59 = vpack.c.bf16 %v30, %v29
  %v60 = vpack.c.bf16 %v32, %v31
  %v61 = vpack.c.bf16 %v34, %v33
  %v62 = vpack.c.bf16 %v36, %v35
  %v63 = vpack.c.bf16 %v38, %v37
  %v64 = vpack.c.bf16 %v40, %v39
  %v65 = vpack.c.bf16 %v42, %v41
  %v66 = vpack.c.bf16 %v44, %v43
  %v67 = vpack.c.bf16 %v46, %v45
  %v68 = vpack.c.bf16 %v48, %v47
  %v69 = vpack.c.bf16 %v50, %v49
  %v70 = vpack.c.bf16 %v52, %v51
  %v71 = vpack.c.bf16 %v54, %v53
  %v72 = vpack.c.bf16 %v56, %v55
  %v73 = vld [vmem:[%s1] sm:$0xf]
  %v74 = vld [vmem:[%s1 + $0x4] sm:$0xf]
  %v75 = vlaneseq
  %v76 = vshrl.u32 %v75, 7
  %v77 = vsub.s32 0, %v76
  %v78 = vrot.slane %v24, %v77
  %v81 = vunpack.c.l.b16 %v73
  %v82 = vunpack.c.l.b16 %v74
  %v83 = vpack.c.b16 %v82, %v81
  %vm85 = vcmask 130048
  %v87 = vsel %vm85, %v57, 0
  %v90 = vsel %vm85, %v58, 0
  %v93 = vsel %vm85, %v59, 0
  %v96 = vsel %vm85, %v60, 0
  %v99 = vsel %vm85, %v61, 0
  %v102 = vsel %vm85, %v62, 0
  %v105 = vsel %vm85, %v63, 0
  %v108 = vsel %vm85, %v64, 0
  %v111 = vsel %vm85, %v65, 0
  %v114 = vsel %vm85, %v66, 0
  %v117 = vsel %vm85, %v67, 0
  %v120 = vsel %vm85, %v68, 0
  %v123 = vsel %vm85, %v69, 0
  %v126 = vsel %vm85, %v70, 0
  %v129 = vsel %vm85, %v71, 0
  %v132 = vsel %vm85, %v72, 0
  %134 = vmatprep.subr.bf16.mxu0 0
  %135 = vmatpush1.bf16.msra.mxu0 %v83
  %136 = vmatprep.subr.bf16.mxu0 0
  %137 = vmatpush1.bf16.msra.mxu0 0
  %138 = vmatprep.subr.bf16.mxu0 0
  %139 = vmatpush1.bf16.msra.mxu0 0
  %140 = vmatprep.subr.bf16.mxu0 0
  %141 = vmatpush1.bf16.msra.mxu0 0
  %142 = vmatprep.subr.bf16.mxu0 0
  %143 = vmatpush1.bf16.msra.mxu0 0
  %144 = vmatprep.subr.bf16.mxu0 0
  %145 = vmatpush1.bf16.msra.mxu0 0
  %146 = vmatprep.subr.bf16.mxu0 0
  %147 = vmatpush1.bf16.msra.mxu0 0
  %148 = vmatprep.subr.bf16.mxu0 0
  %149 = vmatpush1.bf16.msra.mxu0 0
  %150 = vmatprep.subr.bf16.mxu0 0
  %151 = vmatpush1.bf16.msra.mxu0 0
  %152 = vmatprep.subr.bf16.mxu0 0
  %153 = vmatpush1.bf16.msra.mxu0 0
  %154 = vmatprep.subr.bf16.mxu0 0
  %155 = vmatpush1.bf16.msra.mxu0 0
  %156 = vmatprep.subr.bf16.mxu0 0
  %157 = vmatpush1.bf16.msra.mxu0 0
  %158 = vmatprep.subr.bf16.mxu0 0
  %159 = vmatpush1.bf16.msra.mxu0 0
  %160 = vmatprep.subr.bf16.mxu0 0
  %161 = vmatpush1.bf16.msra.mxu0 0
  %162 = vmatprep.subr.bf16.mxu0 0
  %163 = vmatpush1.bf16.msra.mxu0 0
  %164 = vmatprep.subr.bf16.mxu0 0
  %165 = vmatpush1.bf16.msra.mxu0 0
  %166 = vmatprep.mubr.bf16.mxu0 0
  %167 = vmatmul.mubr.bf16.gmra.mrb[0].mxu0 %v87
  %v168 = vpop.f32.mrb[0].mxu0
  %v169 = vadd.f32 %v78, %v168
  %v170 = vpop.f32.mrb[0].mxu0
  %v171 = vpop.f32.mrb[0].mxu0
  %v172 = vadd.f32 %v78, %v171
  %v173 = vpop.f32.mrb[0].mxu0
  %174 = vmatprep.mubr.bf16.mxu0 0
  %175 = vmatmul.mubr.bf16.gmra.mrb[0].mxu0 %v90
  %v176 = vpop.f32.mrb[0].mxu0
  %v177 = vadd.f32 %v78, %v176
  %v178 = vpop.f32.mrb[0].mxu0
  %v179 = vpop.f32.mrb[0].mxu0
  %v180 = vadd.f32 %v78, %v179
  %v181 = vpop.f32.mrb[0].mxu0
  %182 = vmatprep.mubr.bf16.mxu0 0
  %183 = vmatmul.mubr.bf16.gmra.mrb[0].mxu0 %v93
  %v184 = vpop.f32.mrb[0].mxu0
  %v185 = vadd.f32 %v78, %v184
  %v186 = vpop.f32.mrb[0].mxu0
  %v187 = vpop.f32.mrb[0].mxu0
  %v188 = vadd.f32 %v78, %v187
  %v189 = vpop.f32.mrb[0].mxu0
  %190 = vmatprep.mubr.bf16.mxu0 0
  %191 = vmatmul.mubr.bf16.gmra.mrb[0].mxu0 %v96
  %v192 = vpop.f32.mrb[0].mxu0
  %v193 = vadd.f32 %v78, %v192
  %v194 = vpop.f32.mrb[0].mxu0
  %v195 = vpop.f32.mrb[0].mxu0
  %v196 = vadd.f32 %v78, %v195
  %v197 = vpop.f32.mrb[0].mxu0
  %198 = vmatprep.mubr.bf16.mxu0 0
  %199 = vmatmul.mubr.bf16.gmra.mrb[0].mxu0 %v99
  %v200 = vpop.f32.mrb[0].mxu0
  %v201 = vadd.f32 %v78, %v200
  %v202 = vpop.f32.mrb[0].mxu0
  %v203 = vpop.f32.mrb[0].mxu0
  %v204 = vadd.f32 %v78, %v203
  %v205 = vpop.f32.mrb[0].mxu0
  %206 = vmatprep.mubr.bf16.mxu0 0
  %207 = vmatmul.mubr.bf16.gmra.mrb[0].mxu0 %v102
  %v208 = vpop.f32.mrb[0].mxu0
  %v209 = vadd.f32 %v78, %v208
  %v210 = vpop.f32.mrb[0].mxu0
  %v211 = vpop.f32.mrb[0].mxu0
  %v212 = vadd.f32 %v78, %v211
  %v213 = vpop.f32.mrb[0].mxu0
  %214 = vmatprep.mubr.bf16.mxu0 0
  %215 = vmatmul.mubr.bf16.gmra.mrb[0].mxu0 %v105
  %v216 = vpop.f32.mrb[0].mxu0
  %v217 = vadd.f32 %v78, %v216
  %v218 = vpop.f32.mrb[0].mxu0
  %v219 = vpop.f32.mrb[0].mxu0
  %v220 = vadd.f32 %v78, %v219
  %v221 = vpop.f32.mrb[0].mxu0
  %222 = vmatprep.mubr.bf16.mxu0 0
  %223 = vmatmul.mubr.bf16.gmra.mrb[0].mxu0 %v108
  %v224 = vpop.f32.mrb[0].mxu0
  %v225 = vadd.f32 %v78, %v224
  %v226 = vpop.f32.mrb[0].mxu0
  %v227 = vpop.f32.mrb[0].mxu0
  %v228 = vadd.f32 %v78, %v227
  %v229 = vpop.f32.mrb[0].mxu0
  %230 = vmatprep.mubr.bf16.mxu0 0
  %231 = vmatmul.mubr.bf16.gmra.mrb[0].mxu0 %v111
  %v232 = vpop.f32.mrb[0].mxu0
  %v233 = vadd.f32 %v78, %v232
  %v234 = vpop.f32.mrb[0].mxu0
  %v235 = vpop.f32.mrb[0].mxu0
  %v236 = vadd.f32 %v78, %v235
  %v237 = vpop.f32.mrb[0].mxu0
  %238 = vmatprep.mubr.bf16.mxu0 0
  %239 = vmatmul.mubr.bf16.gmra.mrb[0].mxu0 %v114
  %v240 = vpop.f32.mrb[0].mxu0
  %v241 = vadd.f32 %v78, %v240
  %v242 = vpop.f32.mrb[0].mxu0
  %v243 = vpop.f32.mrb[0].mxu0
  %v244 = vadd.f32 %v78, %v243
  %v245 = vpop.f32.mrb[0].mxu0
  %246 = vmatprep.mubr.bf16.mxu0 0
  %247 = vmatmul.mubr.bf16.gmra.mrb[0].mxu0 %v117
  %v248 = vpop.f32.mrb[0].mxu0
  %v249 = vadd.f32 %v78, %v248
  %v250 = vpop.f32.mrb[0].mxu0
  %v251 = vpop.f32.mrb[0].mxu0
  %v252 = vadd.f32 %v78, %v251
  %v253 = vpop.f32.mrb[0].mxu0
  %254 = vmatprep.mubr.bf16.mxu0 0
  %255 = vmatmul.mubr.bf16.gmra.mrb[0].mxu0 %v120
  %v256 = vpop.f32.mrb[0].mxu0
  %v257 = vadd.f32 %v78, %v256
  %v258 = vpop.f32.mrb[0].mxu0
  %v259 = vpop.f32.mrb[0].mxu0
  %v260 = vadd.f32 %v78, %v259
  %v261 = vpop.f32.mrb[0].mxu0
  %262 = vmatprep.mubr.bf16.mxu0 0
  %263 = vmatmul.mubr.bf16.gmra.mrb[0].mxu0 %v123
  %v264 = vpop.f32.mrb[0].mxu0
  %v265 = vadd.f32 %v78, %v264
  %v266 = vpop.f32.mrb[0].mxu0
  %v267 = vpop.f32.mrb[0].mxu0
  %v268 = vadd.f32 %v78, %v267
  %v269 = vpop.f32.mrb[0].mxu0
  %270 = vmatprep.mubr.bf16.mxu0 0
  %271 = vmatmul.mubr.bf16.gmra.mrb[0].mxu0 %v126
  %v272 = vpop.f32.mrb[0].mxu0
  %v273 = vadd.f32 %v78, %v272
  %v274 = vpop.f32.mrb[0].mxu0
  %v275 = vpop.f32.mrb[0].mxu0
  %v276 = vadd.f32 %v78, %v275
  %v277 = vpop.f32.mrb[0].mxu0
  %278 = vmatprep.mubr.bf16.mxu0 0
  %279 = vmatmul.mubr.bf16.gmra.mrb[0].mxu0 %v129
  %v280 = vpop.f32.mrb[0].mxu0
  %v281 = vadd.f32 %v78, %v280
  %v282 = vpop.f32.mrb[0].mxu0
  %v283 = vpop.f32.mrb[0].mxu0
  %v284 = vadd.f32 %v78, %v283
  %v285 = vpop.f32.mrb[0].mxu0
  %286 = vmatprep.mubr.bf16.mxu0 0
  %287 = vmatmul.mubr.bf16.gmra.mrb[0].mxu0 %v132
  %v288 = vpop.f32.mrb[0].mxu0
  %v289 = vadd.f32 %v78, %v288
  %v290 = vpop.f32.mrb[0].mxu0
  %v291 = vpop.f32.mrb[0].mxu0
  %v292 = vadd.f32 %v78, %v291
  %v293 = vpop.f32.mrb[0].mxu0
  %294 = vdwg.mxu0
  %v295 = vmax.f32 %v169, 0.0
  %v296 = vmax.f32 %v172, 0.0
  %v297 = vmax.f32 %v177, 0.0
  %v298 = vmax.f32 %v180, 0.0
  %v299 = vmax.f32 %v185, 0.0
  %v300 = vmax.f32 %v188, 0.0
  %v301 = vmax.f32 %v193, 0.0
  %v302 = vmax.f32 %v196, 0.0
  %v303 = vmax.f32 %v201, 0.0
  %v304 = vmax.f32 %v204, 0.0
  %v305 = vmax.f32 %v209, 0.0
  %v306 = vmax.f32 %v212, 0.0
  %v307 = vmax.f32 %v217, 0.0
  %v308 = vmax.f32 %v220, 0.0
  %v309 = vmax.f32 %v225, 0.0
  %v310 = vmax.f32 %v228, 0.0
  %v311 = vmax.f32 %v233, 0.0
  %v312 = vmax.f32 %v236, 0.0
  %v313 = vmax.f32 %v241, 0.0
  %v314 = vmax.f32 %v244, 0.0
  %v315 = vmax.f32 %v249, 0.0
  %v316 = vmax.f32 %v252, 0.0
  %v317 = vmax.f32 %v257, 0.0
  %v318 = vmax.f32 %v260, 0.0
  %v319 = vmax.f32 %v265, 0.0
  %v320 = vmax.f32 %v268, 0.0
  %v321 = vmax.f32 %v273, 0.0
  %v322 = vmax.f32 %v276, 0.0
  %v323 = vmax.f32 %v281, 0.0
  %v324 = vmax.f32 %v284, 0.0
  %v325 = vmax.f32 %v289, 0.0
  %v326 = vmax.f32 %v292, 0.0
  %v327 = vpack.c.bf16 %v296, %v295
  %v328 = vpack.c.bf16 %v298, %v297
  %v329 = vpack.c.bf16 %v300, %v299
  %v330 = vpack.c.bf16 %v302, %v301
  %v331 = vpack.c.bf16 %v304, %v303
  %v332 = vpack.c.bf16 %v306, %v305
  %v333 = vpack.c.bf16 %v308, %v307
  %v334 = vpack.c.bf16 %v310, %v309
  %v335 = vpack.c.bf16 %v312, %v311
  %v336 = vpack.c.bf16 %v314, %v313
  %v337 = vpack.c.bf16 %v316, %v315
  %v338 = vpack.c.bf16 %v318, %v317
  %v339 = vpack.c.bf16 %v320, %v319
  %v340 = vpack.c.bf16 %v322, %v321
  %v341 = vpack.c.bf16 %v324, %v323
  %v342 = vpack.c.bf16 %v326, %v325
  %v343 = vld [vmem:[%s2] sm:$0xf]
  %v344 = vld [vmem:[%s2 + $0x4] sm:$0xf]
  %v345 = vld [vmem:[%s2 + $0x8] sm:$0xf]
  %v346 = vld [vmem:[%s2 + $0xc] sm:$0xf]
  %v347 = vld [vmem:[%s2 + $0x10] sm:$0xf]
  %v348 = vld [vmem:[%s2 + $0x14] sm:$0xf]
  %v349 = vld [vmem:[%s2 + $0x18] sm:$0xf]
  %v350 = vld [vmem:[%s2 + $0x1c] sm:$0xf]
  %v351 = vld [vmem:[%s2 + $0x20] sm:$0xf]
  %v352 = vld [vmem:[%s2 + $0x24] sm:$0xf]
  %v353 = vld [vmem:[%s2 + $0x28] sm:$0xf]
  %v354 = vld [vmem:[%s2 + $0x2c] sm:$0xf]
  %v355 = vld [vmem:[%s2 + $0x30] sm:$0xf]
  %v356 = vld [vmem:[%s2 + $0x34] sm:$0xf]
  %v357 = vld [vmem:[%s2 + $0x38] sm:$0xf]
  %v358 = vld [vmem:[%s2 + $0x3c] sm:$0xf]
  %v359 = vlaneseq
  %v360 = vshrl.u32 %v359, 7
  %v361 = vsub.s32 1, %v360
  %v362 = vrot.slane %v24, %v361
  %v379 = vunpack.c.l.b16 %v343
  %v380 = vunpack.c.l.b16 %v344
  %v381 = vunpack.c.l.b16 %v345
  %v382 = vunpack.c.l.b16 %v346
  %v383 = vunpack.c.l.b16 %v347
  %v384 = vunpack.c.l.b16 %v348
  %v385 = vunpack.c.l.b16 %v349
  %v386 = vunpack.c.l.b16 %v350
  %v387 = vunpack.c.l.b16 %v351
  %v388 = vunpack.c.l.b16 %v352
  %v389 = vunpack.c.l.b16 %v353
  %v390 = vunpack.c.l.b16 %v354
  %v391 = vunpack.c.l.b16 %v355
  %v392 = vunpack.c.l.b16 %v356
  %v393 = vunpack.c.l.b16 %v357
  %v394 = vunpack.c.l.b16 %v358
  %v395 = vpack.c.b16 %v380, %v379
  %v396 = vpack.c.b16 %v382, %v381
  %v397 = vpack.c.b16 %v384, %v383
  %v398 = vpack.c.b16 %v386, %v385
  %v399 = vpack.c.b16 %v388, %v387
  %v400 = vpack.c.b16 %v390, %v389
  %v401 = vpack.c.b16 %v392, %v391
  %v402 = vpack.c.b16 %v394, %v393
  %411 = vmatprep.subr.bf16.mxu0 0
  %412 = vmatpush1.bf16.msra.mxu0 %v395
  %413 = vmatprep.subr.bf16.mxu0 0
  %414 = vmatpush1.bf16.msra.mxu0 %v396
  %415 = vmatprep.subr.bf16.mxu0 0
  %416 = vmatpush1.bf16.msra.mxu0 %v397
  %417 = vmatprep.subr.bf16.mxu0 0
  %418 = vmatpush1.bf16.msra.mxu0 %v398
  %419 = vmatprep.subr.bf16.mxu0 0
  %420 = vmatpush1.bf16.msra.mxu0 %v399
  %421 = vmatprep.subr.bf16.mxu0 0
  %422 = vmatpush1.bf16.msra.mxu0 %v400
  %423 = vmatprep.subr.bf16.mxu0 0
  %424 = vmatpush1.bf16.msra.mxu0 %v401
  %425 = vmatprep.subr.bf16.mxu0 0
  %426 = vmatpush1.bf16.msra.mxu0 %v402
  %427 = vmatprep.subr.bf16.mxu0 0
  %428 = vmatpush1.bf16.msra.mxu0 0
  %429 = vmatprep.subr.bf16.mxu0 0
  %430 = vmatpush1.bf16.msra.mxu0 0
  %431 = vmatprep.subr.bf16.mxu0 0
  %432 = vmatpush1.bf16.msra.mxu0 0
  %433 = vmatprep.subr.bf16.mxu0 0
  %434 = vmatpush1.bf16.msra.mxu0 0
  %435 = vmatprep.subr.bf16.mxu0 0
  %436 = vmatpush1.bf16.msra.mxu0 0
  %437 = vmatprep.subr.bf16.mxu0 0
  %438 = vmatpush1.bf16.msra.mxu0 0
  %439 = vmatprep.subr.bf16.mxu0 0
  %440 = vmatpush1.bf16.msra.mxu0 0
  %441 = vmatprep.subr.bf16.mxu0 0
  %442 = vmatpush1.bf16.msra.mxu0 0
  %443 = vmatprep.mubr.bf16.mxu0 0
  %444 = vmatmul.mubr.bf16.gmra.mrb[0].mxu0 %v327
  %v445 = vpop.f32.mrb[0].mxu0
  %v446 = vadd.f32 %v362, %v445
  %v447 = vpop.f32.mrb[0].mxu0
  %v448 = vpop.f32.mrb[0].mxu0
  %v449 = vadd.f32 %v362, %v448
  %v450 = vpop.f32.mrb[0].mxu0
  %451 = vmatprep.mubr.bf16.mxu0 0
  %452 = vmatmul.mubr.bf16.gmra.mrb[0].mxu0 %v328
  %v453 = vpop.f32.mrb[0].mxu0
  %v454 = vadd.f32 %v362, %v453
  %v455 = vpop.f32.mrb[0].mxu0
  %v456 = vpop.f32.mrb[0].mxu0
  %v457 = vadd.f32 %v362, %v456
  %v458 = vpop.f32.mrb[0].mxu0
  %459 = vmatprep.mubr.bf16.mxu0 0
  %460 = vmatmul.mubr.bf16.gmra.mrb[0].mxu0 %v329
  %v461 = vpop.f32.mrb[0].mxu0
  %v462 = vadd.f32 %v362, %v461
  %v463 = vpop.f32.mrb[0].mxu0
  %v464 = vpop.f32.mrb[0].mxu0
  %v465 = vadd.f32 %v362, %v464
  %v466 = vpop.f32.mrb[0].mxu0
  %467 = vmatprep.mubr.bf16.mxu0 0
  %468 = vmatmul.mubr.bf16.gmra.mrb[0].mxu0 %v330
  %v469 = vpop.f32.mrb[0].mxu0
  %v470 = vadd.f32 %v362, %v469
  %v471 = vpop.f32.mrb[0].mxu0
  %v472 = vpop.f32.mrb[0].mxu0
  %v473 = vadd.f32 %v362, %v472
  %v474 = vpop.f32.mrb[0].mxu0
  %475 = vmatprep.mubr.bf16.mxu0 0
  %476 = vmatmul.mubr.bf16.gmra.mrb[0].mxu0 %v331
  %v477 = vpop.f32.mrb[0].mxu0
  %v478 = vadd.f32 %v362, %v477
  %v479 = vpop.f32.mrb[0].mxu0
  %v480 = vpop.f32.mrb[0].mxu0
  %v481 = vadd.f32 %v362, %v480
  %v482 = vpop.f32.mrb[0].mxu0
  %483 = vmatprep.mubr.bf16.mxu0 0
  %484 = vmatmul.mubr.bf16.gmra.mrb[0].mxu0 %v332
  %v485 = vpop.f32.mrb[0].mxu0
  %v486 = vadd.f32 %v362, %v485
  %v487 = vpop.f32.mrb[0].mxu0
  %v488 = vpop.f32.mrb[0].mxu0
  %v489 = vadd.f32 %v362, %v488
  %v490 = vpop.f32.mrb[0].mxu0
  %491 = vmatprep.mubr.bf16.mxu0 0
  %492 = vmatmul.mubr.bf16.gmra.mrb[0].mxu0 %v333
  %v493 = vpop.f32.mrb[0].mxu0
  %v494 = vadd.f32 %v362, %v493
  %v495 = vpop.f32.mrb[0].mxu0
  %v496 = vpop.f32.mrb[0].mxu0
  %v497 = vadd.f32 %v362, %v496
  %v498 = vpop.f32.mrb[0].mxu0
  %499 = vmatprep.mubr.bf16.mxu0 0
  %500 = vmatmul.mubr.bf16.gmra.mrb[0].mxu0 %v334
  %v501 = vpop.f32.mrb[0].mxu0
  %v502 = vadd.f32 %v362, %v501
  %v503 = vpop.f32.mrb[0].mxu0
  %v504 = vpop.f32.mrb[0].mxu0
  %v505 = vadd.f32 %v362, %v504
  %v506 = vpop.f32.mrb[0].mxu0
  %507 = vmatprep.mubr.bf16.mxu0 0
  %508 = vmatmul.mubr.bf16.gmra.mrb[0].mxu0 %v335
  %v509 = vpop.f32.mrb[0].mxu0
  %v510 = vadd.f32 %v362, %v509
  %v511 = vpop.f32.mrb[0].mxu0
  %v512 = vpop.f32.mrb[0].mxu0
  %v513 = vadd.f32 %v362, %v512
  %v514 = vpop.f32.mrb[0].mxu0
  %515 = vmatprep.mubr.bf16.mxu0 0
  %516 = vmatmul.mubr.bf16.gmra.mrb[0].mxu0 %v336
  %v517 = vpop.f32.mrb[0].mxu0
  %v518 = vadd.f32 %v362, %v517
  %v519 = vpop.f32.mrb[0].mxu0
  %v520 = vpop.f32.mrb[0].mxu0
  %v521 = vadd.f32 %v362, %v520
  %v522 = vpop.f32.mrb[0].mxu0
  %523 = vmatprep.mubr.bf16.mxu0 0
  %524 = vmatmul.mubr.bf16.gmra.mrb[0].mxu0 %v337
  %v525 = vpop.f32.mrb[0].mxu0
  %v526 = vadd.f32 %v362, %v525
  %v527 = vpop.f32.mrb[0].mxu0
  %v528 = vpop.f32.mrb[0].mxu0
  %v529 = vadd.f32 %v362, %v528
  %v530 = vpop.f32.mrb[0].mxu0
  %531 = vmatprep.mubr.bf16.mxu0 0
  %532 = vmatmul.mubr.bf16.gmra.mrb[0].mxu0 %v338
  %v533 = vpop.f32.mrb[0].mxu0
  %v534 = vadd.f32 %v362, %v533
  %v535 = vpop.f32.mrb[0].mxu0
  %v536 = vpop.f32.mrb[0].mxu0
  %v537 = vadd.f32 %v362, %v536
  %v538 = vpop.f32.mrb[0].mxu0
  %539 = vmatprep.mubr.bf16.mxu0 0
  %540 = vmatmul.mubr.bf16.gmra.mrb[0].mxu0 %v339
  %v541 = vpop.f32.mrb[0].mxu0
  %v542 = vadd.f32 %v362, %v541
  %v543 = vpop.f32.mrb[0].mxu0
  %v544 = vpop.f32.mrb[0].mxu0
  %v545 = vadd.f32 %v362, %v544
  %v546 = vpop.f32.mrb[0].mxu0
  %547 = vmatprep.mubr.bf16.mxu0 0
  %548 = vmatmul.mubr.bf16.gmra.mrb[0].mxu0 %v340
  %v549 = vpop.f32.mrb[0].mxu0
  %v550 = vadd.f32 %v362, %v549
  %v551 = vpop.f32.mrb[0].mxu0
  %v552 = vpop.f32.mrb[0].mxu0
  %v553 = vadd.f32 %v362, %v552
  %v554 = vpop.f32.mrb[0].mxu0
  %555 = vmatprep.mubr.bf16.mxu0 0
  %556 = vmatmul.mubr.bf16.gmra.mrb[0].mxu0 %v341
  %v557 = vpop.f32.mrb[0].mxu0
  %v558 = vadd.f32 %v362, %v557
  %v559 = vpop.f32.mrb[0].mxu0
  %v560 = vpop.f32.mrb[0].mxu0
  %v561 = vadd.f32 %v362, %v560
  %v562 = vpop.f32.mrb[0].mxu0
  %563 = vmatprep.mubr.bf16.mxu0 0
  %564 = vmatmul.mubr.bf16.gmra.mrb[0].mxu0 %v342
  %v565 = vpop.f32.mrb[0].mxu0
  %v566 = vadd.f32 %v362, %v565
  %v567 = vpop.f32.mrb[0].mxu0
  %v568 = vpop.f32.mrb[0].mxu0
  %v569 = vadd.f32 %v362, %v568
  %v570 = vpop.f32.mrb[0].mxu0
  %571 = vdwg.mxu0
  %v572 = vmax.f32 %v446, 0.0
  %v573 = vmax.f32 %v449, 0.0
  %v574 = vmax.f32 %v454, 0.0
  %v575 = vmax.f32 %v457, 0.0
  %v576 = vmax.f32 %v462, 0.0
  %v577 = vmax.f32 %v465, 0.0
  %v578 = vmax.f32 %v470, 0.0
  %v579 = vmax.f32 %v473, 0.0
  %v580 = vmax.f32 %v478, 0.0
  %v581 = vmax.f32 %v481, 0.0
  %v582 = vmax.f32 %v486, 0.0
  %v583 = vmax.f32 %v489, 0.0
  %v584 = vmax.f32 %v494, 0.0
  %v585 = vmax.f32 %v497, 0.0
  %v586 = vmax.f32 %v502, 0.0
  %v587 = vmax.f32 %v505, 0.0
  %v588 = vmax.f32 %v510, 0.0
  %v589 = vmax.f32 %v513, 0.0
  %v590 = vmax.f32 %v518, 0.0
  %v591 = vmax.f32 %v521, 0.0
  %v592 = vmax.f32 %v526, 0.0
  %v593 = vmax.f32 %v529, 0.0
  %v594 = vmax.f32 %v534, 0.0
  %v595 = vmax.f32 %v537, 0.0
  %v596 = vmax.f32 %v542, 0.0
  %v597 = vmax.f32 %v545, 0.0
  %v598 = vmax.f32 %v550, 0.0
  %v599 = vmax.f32 %v553, 0.0
  %v600 = vmax.f32 %v558, 0.0
  %v601 = vmax.f32 %v561, 0.0
  %v602 = vmax.f32 %v566, 0.0
  %v603 = vmax.f32 %v569, 0.0
  %v604 = vpack.c.bf16 %v573, %v572
  %v605 = vpack.c.bf16 %v575, %v574
  %v606 = vpack.c.bf16 %v577, %v576
  %v607 = vpack.c.bf16 %v579, %v578
  %v608 = vpack.c.bf16 %v581, %v580
  %v609 = vpack.c.bf16 %v583, %v582
  %v610 = vpack.c.bf16 %v585, %v584
  %v611 = vpack.c.bf16 %v587, %v586
  %v612 = vpack.c.bf16 %v589, %v588
  %v613 = vpack.c.bf16 %v591, %v590
  %v614 = vpack.c.bf16 %v593, %v592
  %v615 = vpack.c.bf16 %v595, %v594
  %v616 = vpack.c.bf16 %v597, %v596
  %v617 = vpack.c.bf16 %v599, %v598
  %v618 = vpack.c.bf16 %v601, %v600
  %v619 = vpack.c.bf16 %v603, %v602
  %v620 = vld [vmem:[%s3] sm:$0xf]
  %v621 = vld [vmem:[%s3 + $0x4] sm:$0xf]
  %v622 = vld [vmem:[%s3 + $0x8] sm:$0xf]
  %v623 = vld [vmem:[%s3 + $0xc] sm:$0xf]
  %v624 = vld [vmem:[%s3 + $0x10] sm:$0xf]
  %v625 = vld [vmem:[%s3 + $0x14] sm:$0xf]
  %v626 = vld [vmem:[%s3 + $0x18] sm:$0xf]
  %v627 = vld [vmem:[%s3 + $0x1c] sm:$0xf]
  %v628 = vld [vmem:[%s3 + $0x20] sm:$0xf]
  %v629 = vld [vmem:[%s3 + $0x24] sm:$0xf]
  %v630 = vld [vmem:[%s3 + $0x28] sm:$0xf]
  %v631 = vld [vmem:[%s3 + $0x2c] sm:$0xf]
  %v632 = vld [vmem:[%s3 + $0x30] sm:$0xf]
  %v633 = vld [vmem:[%s3 + $0x34] sm:$0xf]
  %v634 = vld [vmem:[%s3 + $0x38] sm:$0xf]
  %v635 = vld [vmem:[%s3 + $0x3c] sm:$0xf]
  %v636 = vlaneseq
  %v637 = vshrl.u32 %v636, 7
  %v638 = vsub.s32 2, %v637
  %v639 = vrot.slane %v24, %v638
  %v656 = vunpack.c.l.b16 %v620
  %v657 = vunpack.c.l.b16 %v621
  %v658 = vunpack.c.l.b16 %v622
  %v659 = vunpack.c.l.b16 %v623
  %v660 = vunpack.c.l.b16 %v624
  %v661 = vunpack.c.l.b16 %v625
  %v662 = vunpack.c.l.b16 %v626
  %v663 = vunpack.c.l.b16 %v627
  %v664 = vunpack.c.l.b16 %v628
  %v665 = vunpack.c.l.b16 %v629
  %v666 = vunpack.c.l.b16 %v630
  %v667 = vunpack.c.l.b16 %v631
  %v668 = vunpack.c.l.b16 %v632
  %v669 = vunpack.c.l.b16 %v633
  %v670 = vunpack.c.l.b16 %v634
  %v671 = vunpack.c.l.b16 %v635
  %v672 = vpack.c.b16 %v657, %v656
  %v673 = vpack.c.b16 %v659, %v658
  %v674 = vpack.c.b16 %v661, %v660
  %v675 = vpack.c.b16 %v663, %v662
  %v676 = vpack.c.b16 %v665, %v664
  %v677 = vpack.c.b16 %v667, %v666
  %v678 = vpack.c.b16 %v669, %v668
  %v679 = vpack.c.b16 %v671, %v670
  %688 = vmatprep.subr.bf16.mxu0 0
  %689 = vmatpush1.bf16.msra.mxu0 %v672
  %690 = vmatprep.subr.bf16.mxu0 0
  %691 = vmatpush1.bf16.msra.mxu0 %v673
  %692 = vmatprep.subr.bf16.mxu0 0
  %693 = vmatpush1.bf16.msra.mxu0 %v674
  %694 = vmatprep.subr.bf16.mxu0 0
  %695 = vmatpush1.bf16.msra.mxu0 %v675
  %696 = vmatprep.subr.bf16.mxu0 0
  %697 = vmatpush1.bf16.msra.mxu0 %v676
  %698 = vmatprep.subr.bf16.mxu0 0
  %699 = vmatpush1.bf16.msra.mxu0 %v677
  %700 = vmatprep.subr.bf16.mxu0 0
  %701 = vmatpush1.bf16.msra.mxu0 %v678
  %702 = vmatprep.subr.bf16.mxu0 0
  %703 = vmatpush1.bf16.msra.mxu0 %v679
  %704 = vmatprep.subr.bf16.mxu0 0
  %705 = vmatpush1.bf16.msra.mxu0 0
  %706 = vmatprep.subr.bf16.mxu0 0
  %707 = vmatpush1.bf16.msra.mxu0 0
  %708 = vmatprep.subr.bf16.mxu0 0
  %709 = vmatpush1.bf16.msra.mxu0 0
  %710 = vmatprep.subr.bf16.mxu0 0
  %711 = vmatpush1.bf16.msra.mxu0 0
  %712 = vmatprep.subr.bf16.mxu0 0
  %713 = vmatpush1.bf16.msra.mxu0 0
  %714 = vmatprep.subr.bf16.mxu0 0
  %715 = vmatpush1.bf16.msra.mxu0 0
  %716 = vmatprep.subr.bf16.mxu0 0
  %717 = vmatpush1.bf16.msra.mxu0 0
  %718 = vmatprep.subr.bf16.mxu0 0
  %719 = vmatpush1.bf16.msra.mxu0 0
  %720 = vmatprep.mubr.bf16.mxu0 0
  %721 = vmatmul.mubr.bf16.gmra.mrb[0].mxu0 %v604
  %v722 = vpop.f32.mrb[0].mxu0
  %v723 = vadd.f32 %v639, %v722
  %v724 = vpop.f32.mrb[0].mxu0
  %v725 = vpop.f32.mrb[0].mxu0
  %v726 = vadd.f32 %v639, %v725
  %v727 = vpop.f32.mrb[0].mxu0
  %728 = vmatprep.mubr.bf16.mxu0 0
  %729 = vmatmul.mubr.bf16.gmra.mrb[0].mxu0 %v605
  %v730 = vpop.f32.mrb[0].mxu0
  %v731 = vadd.f32 %v639, %v730
  %v732 = vpop.f32.mrb[0].mxu0
  %v733 = vpop.f32.mrb[0].mxu0
  %v734 = vadd.f32 %v639, %v733
  %v735 = vpop.f32.mrb[0].mxu0
  %736 = vmatprep.mubr.bf16.mxu0 0
  %737 = vmatmul.mubr.bf16.gmra.mrb[0].mxu0 %v606
  %v738 = vpop.f32.mrb[0].mxu0
  %v739 = vadd.f32 %v639, %v738
  %v740 = vpop.f32.mrb[0].mxu0
  %v741 = vpop.f32.mrb[0].mxu0
  %v742 = vadd.f32 %v639, %v741
  %v743 = vpop.f32.mrb[0].mxu0
  %744 = vmatprep.mubr.bf16.mxu0 0
  %745 = vmatmul.mubr.bf16.gmra.mrb[0].mxu0 %v607
  %v746 = vpop.f32.mrb[0].mxu0
  %v747 = vadd.f32 %v639, %v746
  %v748 = vpop.f32.mrb[0].mxu0
  %v749 = vpop.f32.mrb[0].mxu0
  %v750 = vadd.f32 %v639, %v749
  %v751 = vpop.f32.mrb[0].mxu0
  %752 = vmatprep.mubr.bf16.mxu0 0
  %753 = vmatmul.mubr.bf16.gmra.mrb[0].mxu0 %v608
  %v754 = vpop.f32.mrb[0].mxu0
  %v755 = vadd.f32 %v639, %v754
  %v756 = vpop.f32.mrb[0].mxu0
  %v757 = vpop.f32.mrb[0].mxu0
  %v758 = vadd.f32 %v639, %v757
  %v759 = vpop.f32.mrb[0].mxu0
  %760 = vmatprep.mubr.bf16.mxu0 0
  %761 = vmatmul.mubr.bf16.gmra.mrb[0].mxu0 %v609
  %v762 = vpop.f32.mrb[0].mxu0
  %v763 = vadd.f32 %v639, %v762
  %v764 = vpop.f32.mrb[0].mxu0
  %v765 = vpop.f32.mrb[0].mxu0
  %v766 = vadd.f32 %v639, %v765
  %v767 = vpop.f32.mrb[0].mxu0
  %768 = vmatprep.mubr.bf16.mxu0 0
  %769 = vmatmul.mubr.bf16.gmra.mrb[0].mxu0 %v610
  %v770 = vpop.f32.mrb[0].mxu0
  %v771 = vadd.f32 %v639, %v770
  %v772 = vpop.f32.mrb[0].mxu0
  %v773 = vpop.f32.mrb[0].mxu0
  %v774 = vadd.f32 %v639, %v773
  %v775 = vpop.f32.mrb[0].mxu0
  %776 = vmatprep.mubr.bf16.mxu0 0
  %777 = vmatmul.mubr.bf16.gmra.mrb[0].mxu0 %v611
  %v778 = vpop.f32.mrb[0].mxu0
  %v779 = vadd.f32 %v639, %v778
  %v780 = vpop.f32.mrb[0].mxu0
  %v781 = vpop.f32.mrb[0].mxu0
  %v782 = vadd.f32 %v639, %v781
  %v783 = vpop.f32.mrb[0].mxu0
  %784 = vmatprep.mubr.bf16.mxu0 0
  %785 = vmatmul.mubr.bf16.gmra.mrb[0].mxu0 %v612
  %v786 = vpop.f32.mrb[0].mxu0
  %v787 = vadd.f32 %v639, %v786
  %v788 = vpop.f32.mrb[0].mxu0
  %v789 = vpop.f32.mrb[0].mxu0
  %v790 = vadd.f32 %v639, %v789
  %v791 = vpop.f32.mrb[0].mxu0
  %792 = vmatprep.mubr.bf16.mxu0 0
  %793 = vmatmul.mubr.bf16.gmra.mrb[0].mxu0 %v613
  %v794 = vpop.f32.mrb[0].mxu0
  %v795 = vadd.f32 %v639, %v794
  %v796 = vpop.f32.mrb[0].mxu0
  %v797 = vpop.f32.mrb[0].mxu0
  %v798 = vadd.f32 %v639, %v797
  %v799 = vpop.f32.mrb[0].mxu0
  %800 = vmatprep.mubr.bf16.mxu0 0
  %801 = vmatmul.mubr.bf16.gmra.mrb[0].mxu0 %v614
  %v802 = vpop.f32.mrb[0].mxu0
  %v803 = vadd.f32 %v639, %v802
  %v804 = vpop.f32.mrb[0].mxu0
  %v805 = vpop.f32.mrb[0].mxu0
  %v806 = vadd.f32 %v639, %v805
  %v807 = vpop.f32.mrb[0].mxu0
  %808 = vmatprep.mubr.bf16.mxu0 0
  %809 = vmatmul.mubr.bf16.gmra.mrb[0].mxu0 %v615
  %v810 = vpop.f32.mrb[0].mxu0
  %v811 = vadd.f32 %v639, %v810
  %v812 = vpop.f32.mrb[0].mxu0
  %v813 = vpop.f32.mrb[0].mxu0
  %v814 = vadd.f32 %v639, %v813
  %v815 = vpop.f32.mrb[0].mxu0
  %816 = vmatprep.mubr.bf16.mxu0 0
  %817 = vmatmul.mubr.bf16.gmra.mrb[0].mxu0 %v616
  %v818 = vpop.f32.mrb[0].mxu0
  %v819 = vadd.f32 %v639, %v818
  %v820 = vpop.f32.mrb[0].mxu0
  %v821 = vpop.f32.mrb[0].mxu0
  %v822 = vadd.f32 %v639, %v821
  %v823 = vpop.f32.mrb[0].mxu0
  %824 = vmatprep.mubr.bf16.mxu0 0
  %825 = vmatmul.mubr.bf16.gmra.mrb[0].mxu0 %v617
  %v826 = vpop.f32.mrb[0].mxu0
  %v827 = vadd.f32 %v639, %v826
  %v828 = vpop.f32.mrb[0].mxu0
  %v829 = vpop.f32.mrb[0].mxu0
  %v830 = vadd.f32 %v639, %v829
  %v831 = vpop.f32.mrb[0].mxu0
  %832 = vmatprep.mubr.bf16.mxu0 0
  %833 = vmatmul.mubr.bf16.gmra.mrb[0].mxu0 %v618
  %v834 = vpop.f32.mrb[0].mxu0
  %v835 = vadd.f32 %v639, %v834
  %v836 = vpop.f32.mrb[0].mxu0
  %v837 = vpop.f32.mrb[0].mxu0
  %v838 = vadd.f32 %v639, %v837
  %v839 = vpop.f32.mrb[0].mxu0
  %840 = vmatprep.mubr.bf16.mxu0 0
  %841 = vmatmul.mubr.bf16.gmra.mrb[0].mxu0 %v619
  %v842 = vpop.f32.mrb[0].mxu0
  %v843 = vadd.f32 %v639, %v842
  %v844 = vpop.f32.mrb[0].mxu0
  %v845 = vpop.f32.mrb[0].mxu0
  %v846 = vadd.f32 %v639, %v845
  %v847 = vpop.f32.mrb[0].mxu0
  %848 = vdwg.mxu0
  %v849 = vmax.f32 %v723, 0.0
  %v850 = vmax.f32 %v726, 0.0
  %v851 = vmax.f32 %v731, 0.0
  %v852 = vmax.f32 %v734, 0.0
  %v853 = vmax.f32 %v739, 0.0
  %v854 = vmax.f32 %v742, 0.0
  %v855 = vmax.f32 %v747, 0.0
  %v856 = vmax.f32 %v750, 0.0
  %v857 = vmax.f32 %v755, 0.0
  %v858 = vmax.f32 %v758, 0.0
  %v859 = vmax.f32 %v763, 0.0
  %v860 = vmax.f32 %v766, 0.0
  %v861 = vmax.f32 %v771, 0.0
  %v862 = vmax.f32 %v774, 0.0
  %v863 = vmax.f32 %v779, 0.0
  %v864 = vmax.f32 %v782, 0.0
  %v865 = vmax.f32 %v787, 0.0
  %v866 = vmax.f32 %v790, 0.0
  %v867 = vmax.f32 %v795, 0.0
  %v868 = vmax.f32 %v798, 0.0
  %v869 = vmax.f32 %v803, 0.0
  %v870 = vmax.f32 %v806, 0.0
  %v871 = vmax.f32 %v811, 0.0
  %v872 = vmax.f32 %v814, 0.0
  %v873 = vmax.f32 %v819, 0.0
  %v874 = vmax.f32 %v822, 0.0
  %v875 = vmax.f32 %v827, 0.0
  %v876 = vmax.f32 %v830, 0.0
  %v877 = vmax.f32 %v835, 0.0
  %v878 = vmax.f32 %v838, 0.0
  %v879 = vmax.f32 %v843, 0.0
  %v880 = vmax.f32 %v846, 0.0
  %v881 = vpack.c.bf16 %v850, %v849
  %v882 = vpack.c.bf16 %v852, %v851
  %v883 = vpack.c.bf16 %v854, %v853
  %v884 = vpack.c.bf16 %v856, %v855
  %v885 = vpack.c.bf16 %v858, %v857
  %v886 = vpack.c.bf16 %v860, %v859
  %v887 = vpack.c.bf16 %v862, %v861
  %v888 = vpack.c.bf16 %v864, %v863
  %v889 = vpack.c.bf16 %v866, %v865
  %v890 = vpack.c.bf16 %v868, %v867
  %v891 = vpack.c.bf16 %v870, %v869
  %v892 = vpack.c.bf16 %v872, %v871
  %v893 = vpack.c.bf16 %v874, %v873
  %v894 = vpack.c.bf16 %v876, %v875
  %v895 = vpack.c.bf16 %v878, %v877
  %v896 = vpack.c.bf16 %v880, %v879
  %v897 = vld [vmem:[%s4] sm:$0xf]
  %v898 = vld [vmem:[%s4 + $0x4] sm:$0xf]
  %v899 = vld [vmem:[%s4 + $0x8] sm:$0xf]
  %v900 = vld [vmem:[%s4 + $0xc] sm:$0xf]
  %v901 = vld [vmem:[%s4 + $0x10] sm:$0xf]
  %v902 = vld [vmem:[%s4 + $0x14] sm:$0xf]
  %v903 = vld [vmem:[%s4 + $0x18] sm:$0xf]
  %v904 = vld [vmem:[%s4 + $0x1c] sm:$0xf]
  %v905 = vld [vmem:[%s4 + $0x20] sm:$0xf]
  %v906 = vld [vmem:[%s4 + $0x24] sm:$0xf]
  %v907 = vld [vmem:[%s4 + $0x28] sm:$0xf]
  %v908 = vld [vmem:[%s4 + $0x2c] sm:$0xf]
  %v909 = vld [vmem:[%s4 + $0x30] sm:$0xf]
  %v910 = vld [vmem:[%s4 + $0x34] sm:$0xf]
  %v911 = vld [vmem:[%s4 + $0x38] sm:$0xf]
  %v912 = vld [vmem:[%s4 + $0x3c] sm:$0xf]
  %v929 = vunpack.c.l.b16 %v897
  %v930 = vunpack.c.l.b16 %v898
  %v931 = vunpack.c.l.b16 %v899
  %v932 = vunpack.c.l.b16 %v900
  %v933 = vunpack.c.l.b16 %v901
  %v934 = vunpack.c.l.b16 %v902
  %v935 = vunpack.c.l.b16 %v903
  %v936 = vunpack.c.l.b16 %v904
  %v937 = vunpack.c.l.b16 %v905
  %v938 = vunpack.c.l.b16 %v906
  %v939 = vunpack.c.l.b16 %v907
  %v940 = vunpack.c.l.b16 %v908
  %v941 = vunpack.c.l.b16 %v909
  %v942 = vunpack.c.l.b16 %v910
  %v943 = vunpack.c.l.b16 %v911
  %v944 = vunpack.c.l.b16 %v912
  %v945 = vpack.c.b16 %v930, %v929
  %v946 = vpack.c.b16 %v932, %v931
  %v947 = vpack.c.b16 %v934, %v933
  %v948 = vpack.c.b16 %v936, %v935
  %v949 = vpack.c.b16 %v938, %v937
  %v950 = vpack.c.b16 %v940, %v939
  %v951 = vpack.c.b16 %v942, %v941
  %v952 = vpack.c.b16 %v944, %v943
  %961 = vmatprep.subr.bf16.mxu0 0
  %962 = vmatpush1.bf16.msra.mxu0 %v945
  %963 = vmatprep.subr.bf16.mxu0 0
  %964 = vmatpush1.bf16.msra.mxu0 %v946
  %965 = vmatprep.subr.bf16.mxu0 0
  %966 = vmatpush1.bf16.msra.mxu0 %v947
  %967 = vmatprep.subr.bf16.mxu0 0
  %968 = vmatpush1.bf16.msra.mxu0 %v948
  %969 = vmatprep.subr.bf16.mxu0 0
  %970 = vmatpush1.bf16.msra.mxu0 %v949
  %971 = vmatprep.subr.bf16.mxu0 0
  %972 = vmatpush1.bf16.msra.mxu0 %v950
  %973 = vmatprep.subr.bf16.mxu0 0
  %974 = vmatpush1.bf16.msra.mxu0 %v951
  %975 = vmatprep.subr.bf16.mxu0 0
  %976 = vmatpush1.bf16.msra.mxu0 %v952
  %977 = vmatprep.subr.bf16.mxu0 0
  %978 = vmatpush1.bf16.msra.mxu0 0
  %979 = vmatprep.subr.bf16.mxu0 0
  %980 = vmatpush1.bf16.msra.mxu0 0
  %981 = vmatprep.subr.bf16.mxu0 0
  %982 = vmatpush1.bf16.msra.mxu0 0
  %983 = vmatprep.subr.bf16.mxu0 0
  %984 = vmatpush1.bf16.msra.mxu0 0
  %985 = vmatprep.subr.bf16.mxu0 0
  %986 = vmatpush1.bf16.msra.mxu0 0
  %987 = vmatprep.subr.bf16.mxu0 0
  %988 = vmatpush1.bf16.msra.mxu0 0
  %989 = vmatprep.subr.bf16.mxu0 0
  %990 = vmatpush1.bf16.msra.mxu0 0
  %991 = vmatprep.subr.bf16.mxu0 0
  %992 = vmatpush1.bf16.msra.mxu0 0
  %993 = vmatprep.mubr.bf16.mxu0 0
  %994 = vmatmul.mubr.bf16.gmra.mrb[0].mxu0 %v881
  %v995 = vpop.f32.mrb[0].mxu0
  %v996 = vadd.f32 0.0, %v995
  %v997 = vpop.f32.mrb[0].mxu0
  %v998 = vpop.f32.mrb[0].mxu0
  %v999 = vadd.f32 0.0, %v998
  %v1000 = vpop.f32.mrb[0].mxu0
  %1001 = vmatprep.mubr.bf16.mxu0 0
  %1002 = vmatmul.mubr.bf16.gmra.mrb[0].mxu0 %v882
  %v1003 = vpop.f32.mrb[0].mxu0
  %v1004 = vadd.f32 0.0, %v1003
  %v1005 = vpop.f32.mrb[0].mxu0
  %v1006 = vpop.f32.mrb[0].mxu0
  %v1007 = vadd.f32 0.0, %v1006
  %v1008 = vpop.f32.mrb[0].mxu0
  %1009 = vmatprep.mubr.bf16.mxu0 0
  %1010 = vmatmul.mubr.bf16.gmra.mrb[0].mxu0 %v883
  %v1011 = vpop.f32.mrb[0].mxu0
  %v1012 = vadd.f32 0.0, %v1011
  %v1013 = vpop.f32.mrb[0].mxu0
  %v1014 = vpop.f32.mrb[0].mxu0
  %v1015 = vadd.f32 0.0, %v1014
  %v1016 = vpop.f32.mrb[0].mxu0
  %1017 = vmatprep.mubr.bf16.mxu0 0
  %1018 = vmatmul.mubr.bf16.gmra.mrb[0].mxu0 %v884
  %v1019 = vpop.f32.mrb[0].mxu0
  %v1020 = vadd.f32 0.0, %v1019
  %v1021 = vpop.f32.mrb[0].mxu0
  %v1022 = vpop.f32.mrb[0].mxu0
  %v1023 = vadd.f32 0.0, %v1022
  %v1024 = vpop.f32.mrb[0].mxu0
  %1025 = vmatprep.mubr.bf16.mxu0 0
  %1026 = vmatmul.mubr.bf16.gmra.mrb[0].mxu0 %v885
  %v1027 = vpop.f32.mrb[0].mxu0
  %v1028 = vadd.f32 0.0, %v1027
  %v1029 = vpop.f32.mrb[0].mxu0
  %v1030 = vpop.f32.mrb[0].mxu0
  %v1031 = vadd.f32 0.0, %v1030
  %v1032 = vpop.f32.mrb[0].mxu0
  %1033 = vmatprep.mubr.bf16.mxu0 0
  %1034 = vmatmul.mubr.bf16.gmra.mrb[0].mxu0 %v886
  %v1035 = vpop.f32.mrb[0].mxu0
  %v1036 = vadd.f32 0.0, %v1035
  %v1037 = vpop.f32.mrb[0].mxu0
  %v1038 = vpop.f32.mrb[0].mxu0
  %v1039 = vadd.f32 0.0, %v1038
  %v1040 = vpop.f32.mrb[0].mxu0
  %1041 = vmatprep.mubr.bf16.mxu0 0
  %1042 = vmatmul.mubr.bf16.gmra.mrb[0].mxu0 %v887
  %v1043 = vpop.f32.mrb[0].mxu0
  %v1044 = vadd.f32 0.0, %v1043
  %v1045 = vpop.f32.mrb[0].mxu0
  %v1046 = vpop.f32.mrb[0].mxu0
  %v1047 = vadd.f32 0.0, %v1046
  %v1048 = vpop.f32.mrb[0].mxu0
  %1049 = vmatprep.mubr.bf16.mxu0 0
  %1050 = vmatmul.mubr.bf16.gmra.mrb[0].mxu0 %v888
  %v1051 = vpop.f32.mrb[0].mxu0
  %v1052 = vadd.f32 0.0, %v1051
  %v1053 = vpop.f32.mrb[0].mxu0
  %v1054 = vpop.f32.mrb[0].mxu0
  %v1055 = vadd.f32 0.0, %v1054
  %v1056 = vpop.f32.mrb[0].mxu0
  %1057 = vmatprep.mubr.bf16.mxu0 0
  %1058 = vmatmul.mubr.bf16.gmra.mrb[0].mxu0 %v889
  %v1059 = vpop.f32.mrb[0].mxu0
  %v1060 = vadd.f32 0.0, %v1059
  %v1061 = vpop.f32.mrb[0].mxu0
  %v1062 = vpop.f32.mrb[0].mxu0
  %v1063 = vadd.f32 0.0, %v1062
  %v1064 = vpop.f32.mrb[0].mxu0
  %1065 = vmatprep.mubr.bf16.mxu0 0
  %1066 = vmatmul.mubr.bf16.gmra.mrb[0].mxu0 %v890
  %v1067 = vpop.f32.mrb[0].mxu0
  %v1068 = vadd.f32 0.0, %v1067
  %v1069 = vpop.f32.mrb[0].mxu0
  %v1070 = vpop.f32.mrb[0].mxu0
  %v1071 = vadd.f32 0.0, %v1070
  %v1072 = vpop.f32.mrb[0].mxu0
  %1073 = vmatprep.mubr.bf16.mxu0 0
  %1074 = vmatmul.mubr.bf16.gmra.mrb[0].mxu0 %v891
  %v1075 = vpop.f32.mrb[0].mxu0
  %v1076 = vadd.f32 0.0, %v1075
  %v1077 = vpop.f32.mrb[0].mxu0
  %v1078 = vpop.f32.mrb[0].mxu0
  %v1079 = vadd.f32 0.0, %v1078
  %v1080 = vpop.f32.mrb[0].mxu0
  %1081 = vmatprep.mubr.bf16.mxu0 0
  %1082 = vmatmul.mubr.bf16.gmra.mrb[0].mxu0 %v892
  %v1083 = vpop.f32.mrb[0].mxu0
  %v1084 = vadd.f32 0.0, %v1083
  %v1085 = vpop.f32.mrb[0].mxu0
  %v1086 = vpop.f32.mrb[0].mxu0
  %v1087 = vadd.f32 0.0, %v1086
  %v1088 = vpop.f32.mrb[0].mxu0
  %1089 = vmatprep.mubr.bf16.mxu0 0
  %1090 = vmatmul.mubr.bf16.gmra.mrb[0].mxu0 %v893
  %v1091 = vpop.f32.mrb[0].mxu0
  %v1092 = vadd.f32 0.0, %v1091
  %v1093 = vpop.f32.mrb[0].mxu0
  %v1094 = vpop.f32.mrb[0].mxu0
  %v1095 = vadd.f32 0.0, %v1094
  %v1096 = vpop.f32.mrb[0].mxu0
  %1097 = vmatprep.mubr.bf16.mxu0 0
  %1098 = vmatmul.mubr.bf16.gmra.mrb[0].mxu0 %v894
  %v1099 = vpop.f32.mrb[0].mxu0
  %v1100 = vadd.f32 0.0, %v1099
  %v1101 = vpop.f32.mrb[0].mxu0
  %v1102 = vpop.f32.mrb[0].mxu0
  %v1103 = vadd.f32 0.0, %v1102
  %v1104 = vpop.f32.mrb[0].mxu0
  %1105 = vmatprep.mubr.bf16.mxu0 0
  %1106 = vmatmul.mubr.bf16.gmra.mrb[0].mxu0 %v895
  %v1107 = vpop.f32.mrb[0].mxu0
  %v1108 = vadd.f32 0.0, %v1107
  %v1109 = vpop.f32.mrb[0].mxu0
  %v1110 = vpop.f32.mrb[0].mxu0
  %v1111 = vadd.f32 0.0, %v1110
  %v1112 = vpop.f32.mrb[0].mxu0
  %1113 = vmatprep.mubr.bf16.mxu0 0
  %1114 = vmatmul.mubr.bf16.gmra.mrb[0].mxu0 %v896
  %v1115 = vpop.f32.mrb[0].mxu0
  %v1116 = vadd.f32 0.0, %v1115
  %v1117 = vpop.f32.mrb[0].mxu0
  %v1118 = vpop.f32.mrb[0].mxu0
  %v1119 = vadd.f32 0.0, %v1118
  %v1120 = vpop.f32.mrb[0].mxu0
  %1121 = vdwg.mxu0
  %v1122 = vlaneseq
  %v1123 = vshrl.u32 %v1122, 7
  %v1124 = vsub.s32 3, %v1123
  %v1125 = vrot.slane %v24, %v1124
  %v1126 = vadd.f32 %v996, %v1125
  %v1127 = vadd.f32 %v999, %v1125
  %v1128 = vadd.f32 %v1004, %v1125
  %v1129 = vadd.f32 %v1007, %v1125
  %v1130 = vadd.f32 %v1012, %v1125
  %v1131 = vadd.f32 %v1015, %v1125
  %v1132 = vadd.f32 %v1020, %v1125
  %v1133 = vadd.f32 %v1023, %v1125
  %v1134 = vadd.f32 %v1028, %v1125
  %v1135 = vadd.f32 %v1031, %v1125
  %v1136 = vadd.f32 %v1036, %v1125
  %v1137 = vadd.f32 %v1039, %v1125
  %v1138 = vadd.f32 %v1044, %v1125
  %v1139 = vadd.f32 %v1047, %v1125
  %v1140 = vadd.f32 %v1052, %v1125
  %v1141 = vadd.f32 %v1055, %v1125
  %v1142 = vadd.f32 %v1060, %v1125
  %v1143 = vadd.f32 %v1063, %v1125
  %v1144 = vadd.f32 %v1068, %v1125
  %v1145 = vadd.f32 %v1071, %v1125
  %v1146 = vadd.f32 %v1076, %v1125
  %v1147 = vadd.f32 %v1079, %v1125
  %v1148 = vadd.f32 %v1084, %v1125
  %v1149 = vadd.f32 %v1087, %v1125
  %v1150 = vadd.f32 %v1092, %v1125
  %v1151 = vadd.f32 %v1095, %v1125
  %v1152 = vadd.f32 %v1100, %v1125
  %v1153 = vadd.f32 %v1103, %v1125
  %v1154 = vadd.f32 %v1108, %v1125
  %v1155 = vadd.f32 %v1111, %v1125
  %v1156 = vadd.f32 %v1116, %v1125
  %v1157 = vadd.f32 %v1119, %v1125
  %v1158 = vxor.u32 %v1126, 2147483648
  %v1159 = vxor.u32 %v1127, 2147483648
  %v1160 = vxor.u32 %v1128, 2147483648
  %v1161 = vxor.u32 %v1129, 2147483648
  %v1162 = vxor.u32 %v1130, 2147483648
  %v1163 = vxor.u32 %v1131, 2147483648
  %v1164 = vxor.u32 %v1132, 2147483648
  %v1165 = vxor.u32 %v1133, 2147483648
  %v1166 = vxor.u32 %v1134, 2147483648
  %v1167 = vxor.u32 %v1135, 2147483648
  %v1168 = vxor.u32 %v1136, 2147483648
  %v1169 = vxor.u32 %v1137, 2147483648
  %v1170 = vxor.u32 %v1138, 2147483648
  %v1171 = vxor.u32 %v1139, 2147483648
  %v1172 = vxor.u32 %v1140, 2147483648
  %v1173 = vxor.u32 %v1141, 2147483648
  %v1174 = vxor.u32 %v1142, 2147483648
  %v1175 = vxor.u32 %v1143, 2147483648
  %v1176 = vxor.u32 %v1144, 2147483648
  %v1177 = vxor.u32 %v1145, 2147483648
  %v1178 = vxor.u32 %v1146, 2147483648
  %v1179 = vxor.u32 %v1147, 2147483648
  %v1180 = vxor.u32 %v1148, 2147483648
  %v1181 = vxor.u32 %v1149, 2147483648
  %v1182 = vxor.u32 %v1150, 2147483648
  %v1183 = vxor.u32 %v1151, 2147483648
  %v1184 = vxor.u32 %v1152, 2147483648
  %v1185 = vxor.u32 %v1153, 2147483648
  %v1186 = vxor.u32 %v1154, 2147483648
  %v1187 = vxor.u32 %v1155, 2147483648
  %v1188 = vxor.u32 %v1156, 2147483648
  %v1189 = vxor.u32 %v1157, 2147483648
  %v1190 = vmul.f32 %v1158, 1.442695
  %v1191 = vpow.pop %v1190
  %v1192 = vmul.f32 %v1159, 1.442695
  %v1193 = vpow.pop %v1192
  %v1194 = vmul.f32 %v1160, 1.442695
  %v1195 = vpow.pop %v1194
  %v1196 = vmul.f32 %v1161, 1.442695
  %v1197 = vpow.pop %v1196
  %v1198 = vmul.f32 %v1162, 1.442695
  %v1199 = vpow.pop %v1198
  %v1200 = vmul.f32 %v1163, 1.442695
  %v1201 = vpow.pop %v1200
  %v1202 = vmul.f32 %v1164, 1.442695
  %v1203 = vpow.pop %v1202
  %v1204 = vmul.f32 %v1165, 1.442695
  %v1205 = vpow.pop %v1204
  %v1206 = vmul.f32 %v1166, 1.442695
  %v1207 = vpow.pop %v1206
  %v1208 = vmul.f32 %v1167, 1.442695
  %v1209 = vpow.pop %v1208
  %v1210 = vmul.f32 %v1168, 1.442695
  %v1211 = vpow.pop %v1210
  %v1212 = vmul.f32 %v1169, 1.442695
  %v1213 = vpow.pop %v1212
  %v1214 = vmul.f32 %v1170, 1.442695
  %v1215 = vpow.pop %v1214
  %v1216 = vmul.f32 %v1171, 1.442695
  %v1217 = vpow.pop %v1216
  %v1218 = vmul.f32 %v1172, 1.442695
  %v1219 = vpow.pop %v1218
  %v1220 = vmul.f32 %v1173, 1.442695
  %v1221 = vpow.pop %v1220
  %v1222 = vmul.f32 %v1174, 1.442695
  %v1223 = vpow.pop %v1222
  %v1224 = vmul.f32 %v1175, 1.442695
  %v1225 = vpow.pop %v1224
  %v1226 = vmul.f32 %v1176, 1.442695
  %v1227 = vpow.pop %v1226
  %v1228 = vmul.f32 %v1177, 1.442695
  %v1229 = vpow.pop %v1228
  %v1230 = vmul.f32 %v1178, 1.442695
  %v1231 = vpow.pop %v1230
  %v1232 = vmul.f32 %v1179, 1.442695
  %v1233 = vpow.pop %v1232
  %v1234 = vmul.f32 %v1180, 1.442695
  %v1235 = vpow.pop %v1234
  %v1236 = vmul.f32 %v1181, 1.442695
  %v1237 = vpow.pop %v1236
  %v1238 = vmul.f32 %v1182, 1.442695
  %v1239 = vpow.pop %v1238
  %v1240 = vmul.f32 %v1183, 1.442695
  %v1241 = vpow.pop %v1240
  %v1242 = vmul.f32 %v1184, 1.442695
  %v1243 = vpow.pop %v1242
  %v1244 = vmul.f32 %v1185, 1.442695
  %v1245 = vpow.pop %v1244
  %v1246 = vmul.f32 %v1186, 1.442695
  %v1247 = vpow.pop %v1246
  %v1248 = vmul.f32 %v1187, 1.442695
  %v1249 = vpow.pop %v1248
  %v1250 = vmul.f32 %v1188, 1.442695
  %v1251 = vpow.pop %v1250
  %v1252 = vmul.f32 %v1189, 1.442695
  %v1253 = vpow.pop %v1252
  %v1254 = vadd.f32 %v1191, 1.0
  %v1255 = vadd.f32 %v1193, 1.0
  %v1256 = vadd.f32 %v1195, 1.0
  %v1257 = vadd.f32 %v1197, 1.0
  %v1258 = vadd.f32 %v1199, 1.0
  %v1259 = vadd.f32 %v1201, 1.0
  %v1260 = vadd.f32 %v1203, 1.0
  %v1261 = vadd.f32 %v1205, 1.0
  %v1262 = vadd.f32 %v1207, 1.0
  %v1263 = vadd.f32 %v1209, 1.0
  %v1264 = vadd.f32 %v1211, 1.0
  %v1265 = vadd.f32 %v1213, 1.0
  %v1266 = vadd.f32 %v1215, 1.0
  %v1267 = vadd.f32 %v1217, 1.0
  %v1268 = vadd.f32 %v1219, 1.0
  %v1269 = vadd.f32 %v1221, 1.0
  %v1270 = vadd.f32 %v1223, 1.0
  %v1271 = vadd.f32 %v1225, 1.0
  %v1272 = vadd.f32 %v1227, 1.0
  %v1273 = vadd.f32 %v1229, 1.0
  %v1274 = vadd.f32 %v1231, 1.0
  %v1275 = vadd.f32 %v1233, 1.0
  %v1276 = vadd.f32 %v1235, 1.0
  %v1277 = vadd.f32 %v1237, 1.0
  %v1278 = vadd.f32 %v1239, 1.0
  %v1279 = vadd.f32 %v1241, 1.0
  %v1280 = vadd.f32 %v1243, 1.0
  %v1281 = vadd.f32 %v1245, 1.0
  %v1282 = vadd.f32 %v1247, 1.0
  %v1283 = vadd.f32 %v1249, 1.0
  %v1284 = vadd.f32 %v1251, 1.0
  %v1285 = vadd.f32 %v1253, 1.0
  %v1286 = vrcp.pop %v1254
  %v1287 = vmul.f32 1.0, %v1286
  %v1288 = vrcp.pop %v1255
  %v1289 = vmul.f32 1.0, %v1288
  %v1290 = vrcp.pop %v1256
  %v1291 = vmul.f32 1.0, %v1290
  %v1292 = vrcp.pop %v1257
  %v1293 = vmul.f32 1.0, %v1292
  %v1294 = vrcp.pop %v1258
  %v1295 = vmul.f32 1.0, %v1294
  %v1296 = vrcp.pop %v1259
  %v1297 = vmul.f32 1.0, %v1296
  %v1298 = vrcp.pop %v1260
  %v1299 = vmul.f32 1.0, %v1298
  %v1300 = vrcp.pop %v1261
  %v1301 = vmul.f32 1.0, %v1300
  %v1302 = vrcp.pop %v1262
  %v1303 = vmul.f32 1.0, %v1302
  %v1304 = vrcp.pop %v1263
  %v1305 = vmul.f32 1.0, %v1304
  %v1306 = vrcp.pop %v1264
  %v1307 = vmul.f32 1.0, %v1306
  %v1308 = vrcp.pop %v1265
  %v1309 = vmul.f32 1.0, %v1308
  %v1310 = vrcp.pop %v1266
  %v1311 = vmul.f32 1.0, %v1310
  %v1312 = vrcp.pop %v1267
  %v1313 = vmul.f32 1.0, %v1312
  %v1314 = vrcp.pop %v1268
  %v1315 = vmul.f32 1.0, %v1314
  %v1316 = vrcp.pop %v1269
  %v1317 = vmul.f32 1.0, %v1316
  %v1318 = vrcp.pop %v1270
  %v1319 = vmul.f32 1.0, %v1318
  %v1320 = vrcp.pop %v1271
  %v1321 = vmul.f32 1.0, %v1320
  %v1322 = vrcp.pop %v1272
  %v1323 = vmul.f32 1.0, %v1322
  %v1324 = vrcp.pop %v1273
  %v1325 = vmul.f32 1.0, %v1324
  %v1326 = vrcp.pop %v1274
  %v1327 = vmul.f32 1.0, %v1326
  %v1328 = vrcp.pop %v1275
  %v1329 = vmul.f32 1.0, %v1328
  %v1330 = vrcp.pop %v1276
  %v1331 = vmul.f32 1.0, %v1330
  %v1332 = vrcp.pop %v1277
  %v1333 = vmul.f32 1.0, %v1332
  %v1334 = vrcp.pop %v1278
  %v1335 = vmul.f32 1.0, %v1334
  %v1336 = vrcp.pop %v1279
  %v1337 = vmul.f32 1.0, %v1336
  %v1338 = vrcp.pop %v1280
  %v1339 = vmul.f32 1.0, %v1338
  %v1340 = vrcp.pop %v1281
  %v1341 = vmul.f32 1.0, %v1340
  %v1342 = vrcp.pop %v1282
  %v1343 = vmul.f32 1.0, %v1342
  %v1344 = vrcp.pop %v1283
  %v1345 = vmul.f32 1.0, %v1344
  %v1346 = vrcp.pop %v1284
  %v1347 = vmul.f32 1.0, %v1346
  %v1348 = vrcp.pop %v1285
  %v1349 = vmul.f32 1.0, %v1348
  %vm1350 = vcmask 7168
  %1351 = vst.msk [vmem:[%s6] sm:$0xff] %vm1350, %v1287
  %1352 = vst.msk [vmem:[%s6 + $0x8] sm:$0xff] %vm1350, %v1289
  %1353 = vst.msk [vmem:[%s6 + $0x10] sm:$0xff] %vm1350, %v1291
  %1354 = vst.msk [vmem:[%s6 + $0x18] sm:$0xff] %vm1350, %v1293
  %1355 = vst.msk [vmem:[%s6 + $0x20] sm:$0xff] %vm1350, %v1295
  %1356 = vst.msk [vmem:[%s6 + $0x28] sm:$0xff] %vm1350, %v1297
  %1357 = vst.msk [vmem:[%s6 + $0x30] sm:$0xff] %vm1350, %v1299
  %1358 = vst.msk [vmem:[%s6 + $0x38] sm:$0xff] %vm1350, %v1301
  %1359 = vst.msk [vmem:[%s6 + $0x40] sm:$0xff] %vm1350, %v1303
  %1360 = vst.msk [vmem:[%s6 + $0x48] sm:$0xff] %vm1350, %v1305
  %1361 = vst.msk [vmem:[%s6 + $0x50] sm:$0xff] %vm1350, %v1307
  %1362 = vst.msk [vmem:[%s6 + $0x58] sm:$0xff] %vm1350, %v1309
  %1363 = vst.msk [vmem:[%s6 + $0x60] sm:$0xff] %vm1350, %v1311
  %1364 = vst.msk [vmem:[%s6 + $0x68] sm:$0xff] %vm1350, %v1313
  %1365 = vst.msk [vmem:[%s6 + $0x70] sm:$0xff] %vm1350, %v1315
  %1366 = vst.msk [vmem:[%s6 + $0x78] sm:$0xff] %vm1350, %v1317
  %1367 = vst.msk [vmem:[%s6 + $0x80] sm:$0xff] %vm1350, %v1319
  %1368 = vst.msk [vmem:[%s6 + $0x88] sm:$0xff] %vm1350, %v1321
  %1369 = vst.msk [vmem:[%s6 + $0x90] sm:$0xff] %vm1350, %v1323
  %1370 = vst.msk [vmem:[%s6 + $0x98] sm:$0xff] %vm1350, %v1325
  %1371 = vst.msk [vmem:[%s6 + $0xa0] sm:$0xff] %vm1350, %v1327
  %1372 = vst.msk [vmem:[%s6 + $0xa8] sm:$0xff] %vm1350, %v1329
  %1373 = vst.msk [vmem:[%s6 + $0xb0] sm:$0xff] %vm1350, %v1331
  %1374 = vst.msk [vmem:[%s6 + $0xb8] sm:$0xff] %vm1350, %v1333
  %1375 = vst.msk [vmem:[%s6 + $0xc0] sm:$0xff] %vm1350, %v1335
  %1376 = vst.msk [vmem:[%s6 + $0xc8] sm:$0xff] %vm1350, %v1337
  %1377 = vst.msk [vmem:[%s6 + $0xd0] sm:$0xff] %vm1350, %v1339
  %1378 = vst.msk [vmem:[%s6 + $0xd8] sm:$0xff] %vm1350, %v1341
  %1379 = vst.msk [vmem:[%s6 + $0xe0] sm:$0xff] %vm1350, %v1343
  %1380 = vst.msk [vmem:[%s6 + $0xe8] sm:$0xff] %vm1350, %v1345
  %1381 = vst.msk [vmem:[%s6 + $0xf0] sm:$0xff] %vm1350, %v1347
  %1382 = vst.msk [vmem:[%s6 + $0xf8] sm:$0xff] %vm1350, %v1349
  // Predicated region
  $region26: #{tpu_custom_call.1} parent=0 // pred_check
    _
  $region27: #{tpu_custom_call.1} parent=0 // pred_check_branch
    %1384 = sbr.rel (0) target = $region29
  $region28: #{tpu_custom_call.1} parent=0 // pred_region
    _
  $region29: #{tpu_custom_call.1} parent=0 // pred_fallthru
    _
  // Predicated region
  $region30: #{tpu_custom_call.1} parent=0 // pred_check
    _
  $region31: #{tpu_custom_call.1} parent=0 // pred_check_branch
    %1386 = sbr.rel (0) target = $region33
  $region32: #{tpu_custom_call.1} parent=0 // pred_region
    _
  $region33: #{tpu_custom_call.1} parent=0 // pred_fallthru
    _

</llo_original>
